<compile_context>
chip_gen: v6e
topology: v6e:2x2x1
jax: 0.10.0
libtpu: 0.0.40
codegen_flags: <defaults>
</compile_context>

<pallas_src>
import jax
import jax.numpy as jnp
from jax.experimental import pallas as pl
from jax.experimental.pallas import tpu as pltpu


def _fold_kernel_batched(x_ref, o_ref):
    # x_ref: (tB, L, CS) block  ->  o_ref: (tB, CS, L) block.
    o_ref[...] = jnp.transpose(x_ref[...], (0, 2, 1))


def _fold_kernel_tiled(x_ref, o_ref):
    # Leading batch dim is squeezed by the BlockSpec:
    # x_ref: (L, tCS) block  ->  o_ref: (tCS, L) block (clean 2-D lane/sublane swap).
    o_ref[...] = x_ref[...].T


def _largest_divisor_leq(n, cap):
    cap = max(1, min(n, cap))
    for d in range(cap, 0, -1):
        if n % d == 0:
            return d
    return 1


def fold(x, img_size, fold_size, *, block_budget_bytes=8 << 20):
    """Pallas implementation of Fold.forward.

    Args:
      x: array of shape (B * n_locs^2, C, H, W)
      img_size, fold_size: ints defining n_locs = 2*(img_size//fold_size) - 1
      block_budget_bytes: approximate VMEM budget for one grid step
        (double-buffered input + output blocks).
    Returns:
      array of shape (B, C*H*W, n_locs, n_locs)
    """
    n_locs = 2 * (img_size // fold_size) - 1
    dim_c, dim_x, dim_y = x.shape[1:]
    L = n_locs * n_locs
    B = x.shape[0] // L
    CS = dim_c * dim_x * dim_y
    itemsize = jnp.dtype(x.dtype).itemsize

    # Glue reshape: (B*L, C, H, W) -> (B, L, CS). Pure metadata.
    x2 = x.reshape(B, L, CS)

    # Double-buffered (in + out) bytes per batch if the whole (L, CS) slab is
    # one block: 2 arrays * 2 buffers * L * CS * itemsize.
    per_batch_bytes = 4 * L * CS * itemsize

    # Pure-bandwidth op: tell XLA's scheduler so neighboring HLOs can overlap.
    cost = pl.CostEstimate(
        flops=0, transcendentals=0, bytes_accessed=2 * B * L * CS * itemsize
    )

    def cparams(sem):
        return pltpu.CompilerParams(
            dimension_semantics=sem,
            vmem_limit_bytes=32 << 20,  # safe on v5e/v6e/v7x; ~4x block budget
        )

    if per_batch_bytes <= block_budget_bytes or CS < 128:
        # ---- Batch-folded path: whole (L, CS) per batch fits the budget. ----
        # Fold as many batches as possible into one block so per-step overhead
        # is amortized (instead of one tiny block per batch).
        tB = _largest_divisor_leq(B, block_budget_bytes // max(1, per_batch_bytes))
        grid = (B // tB,)
        out = pl.pallas_call(
            _fold_kernel_batched,
            out_shape=jax.ShapeDtypeStruct((B, CS, L), x.dtype),
            grid=grid,
            in_specs=[pl.BlockSpec((tB, L, CS), lambda b: (b, 0, 0))],
            out_specs=pl.BlockSpec((tB, CS, L), lambda b: (b, 0, 0)),
            compiler_params=cparams(("parallel",)),
            cost_estimate=cost,
        )(x2)
    else:
        # ---- CS-tiled path: CS is large, tile it in lane-aligned chunks. ----
        # Keeps input reads lane-dense (CS on lanes), bounds per-step VMEM
        # (fits v7x's 64 MiB), and exposes a 2-D parallel grid for megacore.
        max_tcs = block_budget_bytes // (4 * L * itemsize)
        tCS = max(128, (max_tcs // 128) * 128)  # multiple of 128, >= 128
        grid = (B, pl.cdiv(CS, tCS))
        out = pl.pallas_call(
            _fold_kernel_tiled,
            out_shape=jax.ShapeDtypeStruct((B, CS, L), x.dtype),
            grid=grid,
            in_specs=[
                pl.BlockSpec((pl.Squeezed(), L, tCS), lambda b, j: (b, 0, j))
            ],
            out_specs=pl.BlockSpec(
                (pl.Squeezed(), tCS, L), lambda b, j: (b, j, 0)
            ),
            compiler_params=cparams(("parallel", "parallel")),
            cost_estimate=cost,
        )(x2)

    # Glue reshape: (B, CS, L) -> (B, CS, n_locs, n_locs). Pure metadata.
    return out.reshape(B, CS, n_locs, n_locs)


def _fold_ref(x, img_size, fold_size):
    """Pure-JAX reference matching the PyTorch forward exactly."""
    n_locs = 2 * (img_size // fold_size) - 1
    dim_c, dim_x, dim_y = x.shape[1:]
    xr = x.reshape(-1, n_locs * n_locs, dim_c, dim_x * dim_y)
    xr = jnp.transpose(xr, (0, 2, 3, 1))
    return xr.reshape(-1, dim_c * dim_x * dim_y, n_locs, n_locs)


if __name__ == "__main__":
    key = jax.random.PRNGKey(0)

    def _check(B, C, H, W, img_size, fold_size, **kw):
        n_locs = 2 * (img_size // fold_size) - 1
        k = jax.random.fold_in(key, B * 1000003 + C * 131 + H * 7 + W)
        x = jax.random.normal(
            k, (B * n_locs * n_locs, C, H, W), dtype=jnp.float32
        )
        y = jax.block_until_ready(fold(x, img_size, fold_size, **kw))
        y_ref = _fold_ref(x, img_size, fold_size)
        assert y.shape == (B, C * H * W, n_locs, n_locs), y.shape
        assert jnp.array_equal(y, y_ref), "Pallas output mismatch vs reference"

    # img_size=16, fold_size=4 -> n_locs=7, L=49.

    # 1) Module's intended use ("works only on 1x1"): tiny CS=4 -> the whole
    #    batch folds into a single block (grid=(1,)), no per-batch tiny steps.
    _check(2, 4, 1, 1, 16, 4)

    # 2) Larger CS=2048 (C=32, 8x8), still within the default 8 MiB budget ->
    #    batch-folded blocks (tB=2, grid=(1,)).
    _check(2, 32, 8, 8, 16, 4)

    # 3) Same shapes with a small budget to force the lane-aligned CS-tiled
    #    path: tCS=512, grid=(2, 4), both axes parallel.
    _check(2, 32, 8, 8, 16, 4, block_budget_bytes=4 * 49 * 512 * 4)

    print("KERNEL_OK")
</pallas_src>

<mosaic_0001>
module attributes {stable_mosaic.version = 11 : i64} {
  func.func @_fold_kernel_batched(%arg0: i32, %arg1: memref<2x49x4xf32, #tpu.memory_space<vmem>>, %arg2: memref<2x4x49xf32, #tpu.memory_space<vmem>>) attributes {dimension_semantics = [#tpu.dimension_semantics<parallel>], iteration_bounds = array<i64: 1>, scalar_prefetch = 0 : i64, scratch_operands = 0 : i64, tpu.core_type = #tpu.core_type<tc>, window_params = [{transform_indices = @transform_0, window_bounds = array<i64: 2, 49, 4>}, {transform_indices = @transform_1, window_bounds = array<i64: 2, 4, 49>}]} {
    %c0 = arith.constant 0 : index
    %c0_0 = arith.constant 0 : index
    %c0_1 = arith.constant 0 : index
    %0 = vector.load %arg1[%c0, %c0_0, %c0_1] : memref<2x49x4xf32, #tpu.memory_space<vmem>>, vector<2x49x4xf32>
    %1 = tpu.transpose %0, [0, 2, 1] : vector<2x49x4xf32> -> vector<2x4x49xf32>
    %c0_2 = arith.constant 0 : index
    %c0_3 = arith.constant 0 : index
    %c0_4 = arith.constant 0 : index
    %2 = vector.load %arg2[%c0_2, %c0_3, %c0_4] : memref<2x4x49xf32, #tpu.memory_space<vmem>>, vector<2x4x49xf32>
    tpu.vector_store %arg2[%c0_2, %c0_3, %c0_4], %1 {strides = array<i32>} : memref<2x4x49xf32, #tpu.memory_space<vmem>>, vector<2x4x49xf32>,
    return
  }
  func.func @transform_0(%arg0: i32) -> (i32, i32, i32) {
    %c0_i32 = arith.constant 0 : i32
    %c0_i32_0 = arith.constant 0 : i32
    %c0_i32_1 = arith.constant 0 : i32
    return %arg0, %c0_i32, %c0_i32_0 : i32, i32, i32
  }
  func.func @transform_1(%arg0: i32) -> (i32, i32, i32) {
    %c0_i32 = arith.constant 0 : i32
    %c0_i32_0 = arith.constant 0 : i32
    %c0_i32_1 = arith.constant 0 : i32
    return %arg0, %c0_i32, %c0_i32_0 : i32, i32, i32
  }
}

</mosaic_0001>

<llo_original>
// kernel: tpu_custom_call.1
$region0: #{tpu_custom_call.1}
  #allocation0 [shape = 'u32[]', space=smem, size = 0x4, offset = 0x4, fixed_abs, tag = 'smem constant byte address 0x4 - core index']
  #allocation1 [shape = 'u32[144,128]{1,0:T(1,128)}', space=vmem, size = 0x12000, scoped, tag = 'internal scratch']
  %s0 = inlined_call_operand.vmem [shape: f32[2,49,4], index: 0, kind: input, shape index: {}]
  %s1 = inlined_call_operand.hbm [shape: f32[2,4,49], index: 1, kind: output, shape index: {}]
  %s2 = sld [smem:[#allocation0]]
  $region14: #{tpu_custom_call.1} parent=0
    _
  %s4 = ssub.s32 1, %s2
  %s5 = scalar_select 0, %s4, %s2
  $region1: #{tpu_custom_call.1} parent=0
    #allocation2 [shape = 'u8[4096]{0}', space=vmem, size = 0x1000, scoped, tag = 'output window, operand 0, single buffered']
    #allocation3 [shape = 's32[1]{0}', space=sflag, size = 0x4, scoped, tag = 'scoped memory for tpu_custom_call.1']
    %6 = vsyncpa [#allocation3], 0
    // Predicated region
    $region2: #{tpu_custom_call.1} parent=1 // pred_check
      _
    $region3: #{tpu_custom_call.1} parent=1 // pred_check_branch
      %8 = sbr.rel (0) target = $region5
    $region4: #{tpu_custom_call.1} parent=1 // pred_region
      _
    $region5: #{tpu_custom_call.1} parent=1 // pred_fallthru
      _
    %v9 = vld [vmem:[%s0] sm:$0xff]
    %v10 = vld [vmem:[%s0 + $0x8] sm:$0xff]
    %v11 = vld [vmem:[%s0 + $0x10] sm:$0xff]
    %v12 = vld [vmem:[%s0 + $0x18] sm:$0xff]
    %v13 = vld [vmem:[%s0 + $0x20] sm:$0xff]
    %v14 = vld [vmem:[%s0 + $0x28] sm:$0xff]
    %v15 = vld [vmem:[%s0 + $0x30] sm:$0x1]
    %v16 = vld [vmem:[%s0 + $0x38] sm:$0xff]
    %v17 = vld [vmem:[%s0 + $0x40] sm:$0xff]
    %v18 = vld [vmem:[%s0 + $0x48] sm:$0xff]
    %v19 = vld [vmem:[%s0 + $0x50] sm:$0xff]
    %v20 = vld [vmem:[%s0 + $0x58] sm:$0xff]
    %v21 = vld [vmem:[%s0 + $0x60] sm:$0xff]
    %v22 = vld [vmem:[%s0 + $0x68] sm:$0x1]
    %23 = vxpose.xlu0.b32.start [1/16] %v9, 128
    %24 = vxpose.xlu0.b32.cont [2/16] %v10, 128
    %25 = vxpose.xlu0.b32.cont [3/16] %v11, 128
    %26 = vxpose.xlu0.b32.cont [4/16] %v12, 128
    %27 = vxpose.xlu0.b32.cont [5/16] %v13, 128
    %28 = vxpose.xlu0.b32.cont [6/16] %v14, 128
    %29 = vxpose.xlu0.b32.cont [7/16] %v15, 128
    %30 = vxpose.xlu0.b32.cont [8/16] 0.0, 128
    %31 = vxpose.xlu0.b32.cont [9/16] 0.0, 128
    %32 = vxpose.xlu0.b32.cont [10/16] 0.0, 128
    %33 = vxpose.xlu0.b32.cont [11/16] 0.0, 128
    %34 = vxpose.xlu0.b32.cont [12/16] 0.0, 128
    %35 = vxpose.xlu0.b32.cont [13/16] 0.0, 128
    %36 = vxpose.xlu0.b32.cont [14/16] 0.0, 128
    %37 = vxpose.xlu0.b32.cont [15/16] 0.0, 128
    %38 = vxpose.xlu0.b32.end [16/16] 0.0, 128
    %v39 = vpop.trf.xlu0
    %v40 = vpop.trf.xlu0
    %v41 = vpop.trf.xlu0
    %v42 = vpop.trf.xlu0
    %v43 = vpop.trf.xlu0
    %v44 = vpop.trf.xlu0
    %v45 = vpop.trf.xlu0
    %v46 = vpop.trf.xlu0
    %v47 = vpop.trf.xlu0
    %v48 = vpop.trf.xlu0
    %v49 = vpop.trf.xlu0
    %v50 = vpop.trf.xlu0
    %v51 = vpop.trf.xlu0
    %v52 = vpop.trf.xlu0
    %v53 = vpop.trf.xlu0
    %v54 = vpop.trf.xlu0
    %55 = vxpose.xlu0.b32.start [1/16] %v16, 128
    %56 = vxpose.xlu0.b32.cont [2/16] %v17, 128
    %57 = vxpose.xlu0.b32.cont [3/16] %v18, 128
    %58 = vxpose.xlu0.b32.cont [4/16] %v19, 128
    %59 = vxpose.xlu0.b32.cont [5/16] %v20, 128
    %60 = vxpose.xlu0.b32.cont [6/16] %v21, 128
    %61 = vxpose.xlu0.b32.cont [7/16] %v22, 128
    %62 = vxpose.xlu0.b32.cont [8/16] 0.0, 128
    %63 = vxpose.xlu0.b32.cont [9/16] 0.0, 128
    %64 = vxpose.xlu0.b32.cont [10/16] 0.0, 128
    %65 = vxpose.xlu0.b32.cont [11/16] 0.0, 128
    %66 = vxpose.xlu0.b32.cont [12/16] 0.0, 128
    %67 = vxpose.xlu0.b32.cont [13/16] 0.0, 128
    %68 = vxpose.xlu0.b32.cont [14/16] 0.0, 128
    %69 = vxpose.xlu0.b32.cont [15/16] 0.0, 128
    %70 = vxpose.xlu0.b32.end [16/16] 0.0, 128
    %v71 = vpop.trf.xlu0
    %v72 = vpop.trf.xlu0
    %v73 = vpop.trf.xlu0
    %v74 = vpop.trf.xlu0
    %v75 = vpop.trf.xlu0
    %v76 = vpop.trf.xlu0
    %v77 = vpop.trf.xlu0
    %v78 = vpop.trf.xlu0
    %v79 = vpop.trf.xlu0
    %v80 = vpop.trf.xlu0
    %v81 = vpop.trf.xlu0
    %v82 = vpop.trf.xlu0
    %v83 = vpop.trf.xlu0
    %v84 = vpop.trf.xlu0
    %v85 = vpop.trf.xlu0
    %v86 = vpop.trf.xlu0
    %vm87 = vcmask 396288
    %88 = vst.msk [vmem:[#allocation2] sm:$0xf] %vm87, %v39
    %89 = vst.msk [vmem:[#allocation2 + $0x4] sm:$0xf] %vm87, %v71
    // Predicated region
    $region6: #{tpu_custom_call.1} parent=1 // pred_check
      _
    $region7: #{tpu_custom_call.1} parent=1 // pred_check_branch
      %91 = sbr.rel (0) target = $region9
    $region8: #{tpu_custom_call.1} parent=1 // pred_region
      %s93 = ssub.s32 128, 128
      %94 = vsyncadd [#allocation3], %s93
      %s95 = sshll.u32 [#allocation2], 4
      %s96 = int_to_ptr.vmem [resolvable:$true] %s95
      %101 = dma.vmem_to_hbm [thread:$0]  %s96, 128, %s1, [#allocation3], 64, 64, 4
    $region9: #{tpu_custom_call.1} parent=1 // pred_fallthru
      _
    // Predicated region
    $region10: #{tpu_custom_call.1} parent=1 // pred_check
      _
    $region11: #{tpu_custom_call.1} parent=1 // pred_check_branch
      %103 = sbr.rel (0) target = $region13
    $region12: #{tpu_custom_call.1} parent=1 // pred_region
      %104 = dma.done [#allocation3], 128
    $region13: #{tpu_custom_call.1} parent=1 // pred_fallthru
      _
    %105 = vsyncpa [#allocation3], 1

</llo_original>
